<compile_context>
chip_gen: v7x
topology: tpu7x:2x2x1
jax: 0.10.0
libtpu: 0.0.40
codegen_flags: <defaults>
</compile_context>

<pallas_src>
import jax
import jax.numpy as jnp
from jax.experimental import pallas as pl
from jax.experimental.pallas import tpu as pltpu


def _dma_copy_kernel(x_hbm_ref, o_hbm_ref, sem):
    # Whole-buffer HBM->HBM identity copy on the DMA engine.
    cp = pltpu.make_async_copy(x_hbm_ref, o_hbm_ref, sem)
    cp.start()
    cp.wait()


def _resolve_shape(total, shape):
    """Resolve a torch-style view shape (at most one -1) against `total`."""
    shape = list(shape)
    if shape.count(-1) > 1:
        raise ValueError("only one -1 allowed in view shape")
    if -1 in shape:
        known = 1
        for s in shape:
            if s != -1:
                known *= s
        shape[shape.index(-1)] = total // known
    prod = 1
    for s in shape:
        prod *= s
    assert prod == total, f"view shape {tuple(shape)} incompatible with {total} elements"
    return tuple(shape)


def _dma_copy(x):
    """Materialize an exact copy of `x` via a single HBM->HBM DMA."""
    nbytes = x.size * jnp.dtype(x.dtype).itemsize
    return pl.pallas_call(
        _dma_copy_kernel,
        out_shape=jax.ShapeDtypeStruct(x.shape, x.dtype),
        in_specs=[pl.BlockSpec(memory_space=pl.ANY)],
        out_specs=pl.BlockSpec(memory_space=pl.ANY),
        scratch_shapes=[pltpu.SemaphoreType.DMA],
        cost_estimate=pl.CostEstimate(
            flops=0, transcendentals=0, bytes_accessed=2 * nbytes),
    )(x)


def view_pallas(x, shape, materialize=True):
    """Equivalent of torch `x.view(*shape)`.

    materialize=False : true view semantics -- pure metadata reshape, zero HBM
                        traffic (what torch .view actually costs).
    materialize=True  : returns a fresh buffer in the target shape, produced by
                        a single HBM->HBM DMA inside a Pallas kernel.
    """
    total = x.size
    out_shape = _resolve_shape(total, shape)

    if not materialize:
        return jnp.reshape(x, out_shape)

    # Present the contiguous buffer in the target shape (row-major reshape is a
    # metadata-only bitcast), then materialize it with one whole-buffer DMA.
    x_r = jnp.reshape(x, out_shape)
    return _dma_copy(x_r)


if __name__ == "__main__":
    key = jax.random.PRNGKey(0)

    # 1) Module-style input: NCHW activation [2, 4, 16, 16], View(shape=(2, -1)).
    x = jax.random.normal(key, (2, 4, 16, 16), dtype=jnp.float32)
    y = jax.block_until_ready(view_pallas(x, (2, -1)))
    y_ref = x.reshape(2, -1)
    assert y.shape == (2, 4 * 16 * 16), y.shape
    assert y.dtype == x.dtype
    assert bool(jnp.array_equal(y, y_ref)), "Pallas view mismatch (module case)"

    # 2) Larger 128-aligned case.
    x2 = jax.random.normal(jax.random.PRNGKey(1), (1024, 640), dtype=jnp.float32)
    y2 = jax.block_until_ready(view_pallas(x2, (-1, 128)))
    assert bool(jnp.array_equal(y2, x2.reshape(-1, 128))), "Pallas view mismatch (aligned case)"

    # 3) Ragged total (105 elements, not a multiple of 128): no pad/slice path
    #    anymore -- the DMA copies the exact buffer.
    x3 = jax.random.normal(jax.random.PRNGKey(2), (3, 5, 7), dtype=jnp.float32)
    y3 = jax.block_until_ready(view_pallas(x3, (-1,)))
    assert bool(jnp.array_equal(y3, x3.reshape(-1))), "Pallas view mismatch (ragged case)"

    # 4) bf16 + true-view (metadata) fast path.
    x4 = jax.random.normal(jax.random.PRNGKey(3), (2, 8, 32), dtype=jnp.bfloat16)
    y4 = jax.block_until_ready(view_pallas(x4, (2, -1), materialize=False))
    assert y4.shape == (2, 8 * 32)
    assert bool(jnp.array_equal(y4, x4.reshape(2, -1))), "metadata view mismatch"

    print("KERNEL_OK")
</pallas_src>

<mosaic_0001>
module attributes {stable_mosaic.version = 11 : i64} {
  func.func @_dma_copy_kernel(%arg0: memref<2x1024xf32, #tpu.memory_space<any>>, %arg1: memref<2x1024xf32, #tpu.memory_space<any>>, %arg2: memref<!tpu.dma_semaphore, #tpu.memory_space<semaphore_mem>>) attributes {dimension_semantics = [], scalar_prefetch = 0 : i64, scratch_operands = 1 : i64, tpu.core_type = #tpu.core_type<tc>} {
    tpu.enqueue_dma source(%arg0 : memref<2x1024xf32, #tpu.memory_space<any>>) target(%arg1 : memref<2x1024xf32, #tpu.memory_space<any>>) target_semaphore(%arg2 : memref<!tpu.dma_semaphore, #tpu.memory_space<semaphore_mem>>)
    tpu.wait_dma2 semaphore(%arg2 : memref<!tpu.dma_semaphore, #tpu.memory_space<semaphore_mem>>) src(%arg0 : memref<2x1024xf32, #tpu.memory_space<any>>) dst(%arg1 : memref<2x1024xf32, #tpu.memory_space<any>>)
    return
  }
}

</mosaic_0001>

<llo_original>
// kernel: tpu_custom_call.1
$region0: #{tpu_custom_call.1}
  #allocation0 [shape = 'u32[]', space=smem, size = 0x4, offset = 0x4, fixed_abs, tag = 'smem constant byte address 0x4 - core index']
  #allocation1 [shape = 'u32[144,128]{1,0:T(1,128)}', space=vmem, size = 0x12000, scoped, tag = 'internal scratch']
  #allocation2 [shape = 's32[1]{0}', space=sflag, size = 0x4, scoped, tag = 'scratch operand']
  #allocation3 [shape = 's32[]', space=sflag, size = 0x4, offset = 0, fixed_abs, tag = 'sflag constant byte address 0x0 - dummy sync flag']
  #allocation4 [shape = 'u32[0]{0}', space=smem, size = 0, offset = 0, fixed_abs, tag = 'smem constant byte address 0x0 - null']
  %s0 = inlined_call_operand.hbm [shape: f32[2,1024], index: 0, kind: input, shape index: {}]
  %s1 = inlined_call_operand.hbm [shape: f32[2,1024], index: 1, kind: output, shape index: {}]
  %s2 = sld [smem:[#allocation0]]
  $region2: #{tpu_custom_call.1} parent=0
    _
  %s4 = ssub.s32 1, %s2
  %s5 = scalar_select 0, %s4, %s2
  %s7 = sshll.u32 1, 14
  %s8 = sxor.u32 4294967295, %s7
  %s11 = sshll.u32 3, 24
  %s12 = sxor.u32 4294967295, %s11
  %s13 = sand.u32 0, %s12
  %s15 = sor.u32 %s13, 0
  %18 = dma.general %s0, 256, %s1, [#allocation2], [#allocation3], [#allocation4], %s15, 0
  %s19 = smul.u32 2, 1
  %s20 = smul.u32 %s19, 8
  %s21 = sshll.u32 %s20, 4
  %22 = dma.done [#allocation2], %s21
  %23 = vsyncmov [#allocation2]
  %s24 = vpop.sfrf %23
  %p25 = scmp.eq.s32.totalorder %s24, 0
  %p26 = pneg %p25
  %28 = shalt.err (%p26)

</llo_original>
